<compile_context>
chip_gen: v7x
topology: tpu7x:2x2x1
jax: 0.10.0
libtpu: 0.0.40
codegen_flags: <defaults>
</compile_context>

<pallas_src>
import jax
import jax.numpy as jnp
from jax.experimental import pallas as pl
from jax.experimental.pallas import tpu as pltpu


# ----------------------------------------------------------------------------
# Pallas kernel: whole MLP hot path (4 matmuls + ReLUs), one invocation / tile.
#   gf_ref : (TB, 512) bf16   global features
#   ex_ref : (TB, 128) bf16   [kpt(3) | rot_flat(9) | zeros(116)]
#   w1_ref : (512, 256) bf16  fc1 (BN1 folded), (in, out) layout
#   ws_ref : (640, 128) bf16  packed small weights, all 128-lane dense:
#              rows   0:256  fc2  (BN2 folded), real cols 0:64
#              rows 256:384  merged heads vs h2 (trans cols 0:32, rot 32:64)
#              rows 384:512  merged heads vs extra (kpt rows 0:3, rot rows 3:12)
#              rows 512:640  block-diagonal fc4_1|fc4_2 (out cols 0:3 | 3:9)
#   b_ref  : (1, 640)  f32    packed biases [b1(256) | b2(128) | b3(128) | b4(128)]
#   o_ref  : (TB, 128) f32    [trans(3) | rot6d(6) | zeros(119)]
# ----------------------------------------------------------------------------
def action_net_kernel(gf_ref, ex_ref, w1_ref, ws_ref, b_ref, o_ref):
    b1 = b_ref[:, 0:256]
    b2 = b_ref[:, 256:384]
    b3 = b_ref[:, 384:512]
    b4 = b_ref[:, 512:640]

    # fc1 + bn1 (folded) + relu        [drop1 = identity in eval mode]
    h1 = jnp.dot(gf_ref[...], w1_ref[...], preferred_element_type=jnp.float32)
    h1 = jnp.maximum(h1 + b1, 0.0).astype(jnp.bfloat16)

    # fc2 + bn2 (folded) + relu        [drop2 = identity in eval mode]
    # 128-lane dense; cols 64..127 are exactly zero (zero weights + zero bias).
    h2 = jnp.dot(h1, ws_ref[0:256, :], preferred_element_type=jnp.float32)
    h2 = jnp.maximum(h2 + b2, 0.0).astype(jnp.bfloat16)

    # merged heads: cols 0..31 = trans branch (fc3_1), cols 32..63 = rot (fc3_2)
    g = (jnp.dot(h2, ws_ref[256:384, :], preferred_element_type=jnp.float32)
         + jnp.dot(ex_ref[...], ws_ref[384:512, :],
                   preferred_element_type=jnp.float32)
         + b3)
    g = jnp.maximum(g, 0.0).astype(jnp.bfloat16)

    # merged final layer: block-diagonal fc4_1 | fc4_2, 128-lane dense output
    o_ref[...] = (jnp.dot(g, ws_ref[512:640, :],
                          preferred_element_type=jnp.float32)
                  + b4).astype(o_ref.dtype)


# ----------------------------------------------------------------------------
# Parameter construction (deterministic, mirrors nn.Module __init__ shapes)
# ----------------------------------------------------------------------------
def init_params(key):
    def linear(key, out_f, in_f):
        kw, kb = jax.random.split(key)
        w = jax.random.normal(kw, (out_f, in_f), jnp.float32) * 0.05
        b = jax.random.normal(kb, (out_f,), jnp.float32) * 0.05
        return w, b

    def bn(key, n):
        k1, k2, k3, k4 = jax.random.split(key, 4)
        gamma = jax.random.uniform(k1, (n,), jnp.float32, 0.5, 1.5)
        beta = jax.random.normal(k2, (n,), jnp.float32) * 0.1
        mean = jax.random.normal(k3, (n,), jnp.float32) * 0.1
        var = jax.random.uniform(k4, (n,), jnp.float32, 0.5, 1.5)
        return gamma, beta, mean, var

    keys = jax.random.split(key, 10)
    p = {}
    p["fc1"] = linear(keys[0], 256, 512)
    p["bn1"] = bn(keys[1], 256)
    p["fc2"] = linear(keys[2], 64, 256)
    p["bn2"] = bn(keys[3], 64)
    p["fc3_1"] = linear(keys[4], 32, 64 + 3)
    p["bn3_1"] = bn(keys[5], 32)
    p["fc4_1"] = linear(keys[6], 3, 32)
    p["fc3_2"] = linear(keys[7], 32, 64 + 9)
    p["bn3_2"] = bn(keys[8], 32)
    p["fc4_2"] = linear(keys[9], 6, 32)
    return p


def fold_bn(w, b, bn_params, eps=1e-5):
    """Fold eval-mode BatchNorm1d into the preceding Linear; returns (in,out) W."""
    gamma, beta, mean, var = bn_params
    scale = gamma / jnp.sqrt(var + eps)
    shift = beta - mean * scale
    w_t = w.T * scale[None, :]            # (in, out)
    b_f = b * scale + shift               # (out,)
    return w_t, b_f[None, :]


# ----------------------------------------------------------------------------
# One-time weight preprocessing: BN folding + head merge + slab packing + bf16.
# ----------------------------------------------------------------------------
def prepare_params(params):
    w1, b1 = fold_bn(*params["fc1"], params["bn1"])        # (512,256),(1,256)
    w2, b2 = fold_bn(*params["fc2"], params["bn2"])        # (256,64), (1,64)
    w31, b31 = fold_bn(*params["fc3_1"], params["bn3_1"])  # (67,32),  (1,32)
    w32, b32 = fold_bn(*params["fc3_2"], params["bn3_2"])  # (73,32),  (1,32)
    w41 = params["fc4_1"][0].T                             # (32,3)
    b41 = params["fc4_1"][1]                               # (3,)
    w42 = params["fc4_2"][0].T                             # (32,6)
    b42 = params["fc4_2"][1]                               # (6,)

    w31h, w31k = w31[:64], w31[64:]                        # (64,32),(3,32)
    w32h, w32r = w32[:64], w32[64:]                        # (64,32),(9,32)

    # small-weight slab (640, 128), all sub-blocks padded to 128 lanes / 128 K
    ws = jnp.zeros((640, 128), jnp.float32)
    # fc2 (K=256), real output lanes 0..63
    ws = ws.at[0:256, 0:64].set(w2)
    # merged head weights vs h2 (K=128 to consume lane-padded h2)
    ws = ws.at[256:320, 0:32].set(w31h)                    # trans head
    ws = ws.at[256:320, 32:64].set(w32h)                   # rot head
    # merged head weights vs extra slab (K=128): kpt rows 0..2, rot rows 3..11
    ws = ws.at[384:387, 0:32].set(w31k)
    ws = ws.at[387:396, 32:64].set(w32r)
    # block-diagonal final layer (K=128 to consume lane-padded g)
    ws = ws.at[512:544, 0:3].set(w41)
    ws = ws.at[544:576, 3:9].set(w42)

    # bias slab (1, 640), all segment starts 128-aligned; padded lanes are zero
    bias = jnp.zeros((1, 640), jnp.float32)
    bias = bias.at[:, 0:256].set(b1)
    bias = bias.at[:, 256:320].set(b2)
    bias = bias.at[:, 384:416].set(b31)
    bias = bias.at[:, 416:448].set(b32)
    bias = bias.at[:, 512:515].set(b41[None, :])
    bias = bias.at[:, 515:521].set(b42[None, :])

    return {
        "w1": w1.astype(jnp.bfloat16),
        "ws": ws.astype(jnp.bfloat16),
        "bias": bias,
    }


# ----------------------------------------------------------------------------
# Forward wrapper (jitted): pack small extra slab, pick batch tile, pallas_call.
# ----------------------------------------------------------------------------
@jax.jit
def action_net_forward(prepped, global_features, mean_kpt_pred, rot_mat_pred):
    B = global_features.shape[0]
    bf = jnp.bfloat16

    gf = global_features.astype(bf)                         # (B, 512)
    extra = jnp.concatenate(                                # (B, 128)
        [mean_kpt_pred.astype(bf),
         rot_mat_pred.reshape(B, 9).astype(bf),
         jnp.zeros((B, 116), bf)], axis=-1)

    # Batch tiling:
    #  - small B: a single tile, rounded up to a multiple of 16 rows
    #    (bf16 packs 16 rows / vreg sublane group; avoids masked vregs on v5e).
    #  - large B: tiles of up to 512 rows, and >= 2 grid steps so the
    #    "parallel" axis shards the batch across both v7x TensorCores.
    if B <= 128:
        TB = ((B + 15) // 16) * 16
    else:
        half = (B + 1) // 2
        TB = min(512, ((half + 127) // 128) * 128)
    Bp = ((B + TB - 1) // TB) * TB
    if Bp != B:
        pad = Bp - B
        gf = jnp.pad(gf, ((0, pad), (0, 0)))
        extra = jnp.pad(extra, ((0, pad), (0, 0)))

    # TODO(synk): cross-pallas_call weight residency (P10) not implemented;
    # w1/ws/bias (~350 KiB bf16) are re-DMAed each call.  At small B the call
    # is launch+weight-DMA bound; the real fix is P10 or fusing this kernel
    # into the producer of global_features.
    # TODO(synk): pipeline_mode=pl.Buffered(1) on the constant-index weight
    # specs would drop ~350 KiB of dead double-buffer VMEM on v7x; omitted
    # here to stay on the most portable BlockSpec API surface.
    out = pl.pallas_call(
        action_net_kernel,
        out_shape=jax.ShapeDtypeStruct((Bp, 128), jnp.float32),
        grid_spec=pltpu.PrefetchScalarGridSpec(
            num_scalar_prefetch=0,
            grid=(Bp // TB,),
            in_specs=[
                pl.BlockSpec((TB, 512), lambda i: (i, 0)),
                pl.BlockSpec((TB, 128), lambda i: (i, 0)),
                pl.BlockSpec((512, 256), lambda i: (0, 0)),
                pl.BlockSpec((640, 128), lambda i: (0, 0)),
                pl.BlockSpec((1, 640), lambda i: (0, 0)),
            ],
            out_specs=pl.BlockSpec((TB, 128), lambda i: (i, 0)),
        ),
        compiler_params=pltpu.CompilerParams(
            dimension_semantics=("parallel",)),
    )(gf, extra, prepped["w1"], prepped["ws"], prepped["bias"])

    return out[:B, 0:3], out[:B, 3:9]


# ----------------------------------------------------------------------------
# References for validation
# ----------------------------------------------------------------------------
def reference_forward_f32(params, gf, kpt, rot, eps=1e-5):
    """Pure-fp32 mirror of the PyTorch module in eval mode."""
    def bn(x, p):
        gamma, beta, mean, var = p
        return (x - mean) / jnp.sqrt(var + eps) * gamma + beta

    def lin(x, p):
        w, b = p
        return x @ w.T + b

    h = jax.nn.relu(bn(lin(gf, params["fc1"]), params["bn1"]))
    h = jax.nn.relu(bn(lin(h, params["fc2"]), params["bn2"]))
    tf = jnp.concatenate([h, kpt], axis=-1)
    tf = jax.nn.relu(bn(lin(tf, params["fc3_1"]), params["bn3_1"]))
    trans = lin(tf, params["fc4_1"])
    rf = jnp.concatenate([h, rot.reshape(rot.shape[0], -1)], axis=-1)
    rf = jax.nn.relu(bn(lin(rf, params["fc3_2"]), params["bn3_2"]))
    rot6d = lin(rf, params["fc4_2"])
    return trans, rot6d


def reference_forward_bf16(prepped, gf, kpt, rot):
    """Pure-JAX mirror of the kernel's packed bf16 math (tight check)."""
    bf = jnp.bfloat16
    B = gf.shape[0]
    x = gf.astype(bf)
    extra = jnp.concatenate(
        [kpt.astype(bf), rot.reshape(B, 9).astype(bf),
         jnp.zeros((B, 116), bf)], axis=-1)
    w1, ws, b = prepped["w1"], prepped["ws"], prepped["bias"]
    h1 = jnp.maximum(jnp.dot(x, w1, preferred_element_type=jnp.float32)
                     + b[:, 0:256], 0.0).astype(bf)
    h2 = jnp.maximum(jnp.dot(h1, ws[0:256, :],
                             preferred_element_type=jnp.float32)
                     + b[:, 256:384], 0.0).astype(bf)
    g = jnp.maximum(jnp.dot(h2, ws[256:384, :],
                            preferred_element_type=jnp.float32)
                    + jnp.dot(extra, ws[384:512, :],
                              preferred_element_type=jnp.float32)
                    + b[:, 384:512], 0.0).astype(bf)
    out = (jnp.dot(g, ws[512:640, :], preferred_element_type=jnp.float32)
           + b[:, 512:640])
    return out[:, 0:3], out[:, 3:9]


if __name__ == "__main__":
    key = jax.random.PRNGKey(0)
    k_in, k_par = jax.random.split(key)
    k1, k2, k3 = jax.random.split(k_in, 3)

    B = 8
    global_features = jax.random.normal(k1, (B, 512), jnp.float32)
    mean_kpt_pred = jax.random.normal(k2, (B, 3), jnp.float32)
    rot_mat_pred = jax.random.normal(k3, (B, 3, 3), jnp.float32)

    params = init_params(k_par)
    prepped = jax.tree_util.tree_map(jax.block_until_ready,
                                     prepare_params(params))  # one-time prep

    trans_of_pred, rot_of_6d_pred = action_net_forward(
        prepped, global_features, mean_kpt_pred, rot_mat_pred)
    jax.block_until_ready((trans_of_pred, rot_of_6d_pred))

    assert trans_of_pred.shape == (B, 3) and rot_of_6d_pred.shape == (B, 6)

    # Tight check: kernel vs identical packed-bf16 math in plain JAX.
    bt, br = reference_forward_bf16(prepped, global_features, mean_kpt_pred,
                                    rot_mat_pred)
    assert jnp.allclose(trans_of_pred, bt, atol=1e-3, rtol=1e-3)
    assert jnp.allclose(rot_of_6d_pred, br, atol=1e-3, rtol=1e-3)

    # Loose check: kernel (bf16 weights) vs fp32 module reference.
    ft, fr = reference_forward_f32(params, global_features, mean_kpt_pred,
                                   rot_mat_pred)
    assert jnp.allclose(trans_of_pred, ft, atol=5e-2, rtol=5e-2)
    assert jnp.allclose(rot_of_6d_pred, fr, atol=5e-2, rtol=5e-2)

    # TODO(synk): Dropout(0.4) and BatchNorm running-stat updates are
    # training-only; this kernel reproduces eval-mode (module.eval()) semantics.
    print("KERNEL_OK")
</pallas_src>

<mosaic_0001>
module attributes {stable_mosaic.version = 11 : i64} {
  func.func @action_net_kernel(%arg0: i32, %arg1: memref<16x512xbf16, #tpu.memory_space<vmem>>, %arg2: memref<16x128xbf16, #tpu.memory_space<vmem>>, %arg3: memref<512x256xbf16, #tpu.memory_space<vmem>>, %arg4: memref<640x128xbf16, #tpu.memory_space<vmem>>, %arg5: memref<1x640xf32, #tpu.memory_space<vmem>>, %arg6: memref<16x128xf32, #tpu.memory_space<vmem>>) attributes {dimension_semantics = [#tpu.dimension_semantics<parallel>], iteration_bounds = array<i64: 1>, scalar_prefetch = 0 : i64, scratch_operands = 0 : i64, tpu.core_type = #tpu.core_type<tc>, window_params = [{transform_indices = @transform_0, window_bounds = array<i64: 16, 512>}, {transform_indices = @transform_1, window_bounds = array<i64: 16, 128>}, {pipeline_mode = #tpu.pipeline_mode<synchronous>, transform_indices = @transform_2, window_bounds = array<i64: 512, 256>}, {pipeline_mode = #tpu.pipeline_mode<synchronous>, transform_indices = @transform_3, window_bounds = array<i64: 640, 128>}, {pipeline_mode = #tpu.pipeline_mode<synchronous>, transform_indices = @transform_4, window_bounds = array<i64: 1, 640>}, {transform_indices = @transform_5, window_bounds = array<i64: 16, 128>}]} {
    %c0 = arith.constant 0 : index
    %c0_0 = arith.constant 0 : index
    %0 = vector.load %arg5[%c0, %c0_0] : memref<1x640xf32, #tpu.memory_space<vmem>>, vector<1x256xf32>
    %c0_1 = arith.constant 0 : index
    %c256 = arith.constant 256 : index
    %1 = vector.load %arg5[%c0_1, %c256] : memref<1x640xf32, #tpu.memory_space<vmem>>, vector<1x128xf32>
    %c0_2 = arith.constant 0 : index
    %c384 = arith.constant 384 : index
    %2 = vector.load %arg5[%c0_2, %c384] : memref<1x640xf32, #tpu.memory_space<vmem>>, vector<1x128xf32>
    %c0_3 = arith.constant 0 : index
    %c512 = arith.constant 512 : index
    %3 = vector.load %arg5[%c0_3, %c512] : memref<1x640xf32, #tpu.memory_space<vmem>>, vector<1x128xf32>
    %c0_4 = arith.constant 0 : index
    %c0_5 = arith.constant 0 : index
    %4 = vector.load %arg1[%c0_4, %c0_5] : memref<16x512xbf16, #tpu.memory_space<vmem>>, vector<16x512xbf16>
    %c0_6 = arith.constant 0 : index
    %c0_7 = arith.constant 0 : index
    %5 = vector.load %arg3[%c0_6, %c0_7] : memref<512x256xbf16, #tpu.memory_space<vmem>>, vector<512x256xbf16>
    %cst = arith.constant dense<0.000000e+00> : vector<16x256xf32>
    %6 = tpu.matmul %4, %5, %cst {dimension_numbers = #tpu.dot_dimension_numbers<[1], [0], [0], [1], [0, 0, 1, 1], [], []>} : vector<16x512xbf16>, vector<512x256xbf16>, vector<16x256xf32> -> vector<16x256xf32>
    %7 = vector.broadcast %0 : vector<1x256xf32> to vector<16x256xf32>
    %8 = arith.addf %6, %7 : vector<16x256xf32>
    %cst_8 = arith.constant 0.000000e+00 : f32
    %9 = vector.broadcast %cst_8 : f32 to vector<16x256xf32>
    %10 = arith.maximumf %8, %9 : vector<16x256xf32>
    %11 = arith.truncf %10 : vector<16x256xf32> to vector<16x256xbf16>
    %c0_9 = arith.constant 0 : index
    %c0_10 = arith.constant 0 : index
    %12 = vector.load %arg4[%c0_9, %c0_10] : memref<640x128xbf16, #tpu.memory_space<vmem>>, vector<256x128xbf16>
    %cst_11 = arith.constant dense<0.000000e+00> : vector<16x128xf32>
    %13 = tpu.matmul %11, %12, %cst_11 {dimension_numbers = #tpu.dot_dimension_numbers<[1], [0], [0], [1], [0, 0, 1, 1], [], []>} : vector<16x256xbf16>, vector<256x128xbf16>, vector<16x128xf32> -> vector<16x128xf32>
    %14 = vector.broadcast %1 : vector<1x128xf32> to vector<16x128xf32>
    %15 = arith.addf %13, %14 : vector<16x128xf32>
    %cst_12 = arith.constant 0.000000e+00 : f32
    %16 = vector.broadcast %cst_12 : f32 to vector<16x128xf32>
    %17 = arith.maximumf %15, %16 : vector<16x128xf32>
    %18 = arith.truncf %17 : vector<16x128xf32> to vector<16x128xbf16>
    %c256_13 = arith.constant 256 : index
    %c0_14 = arith.constant 0 : index
    %19 = vector.load %arg4[%c256_13, %c0_14] : memref<640x128xbf16, #tpu.memory_space<vmem>>, vector<128x128xbf16>
    %cst_15 = arith.constant dense<0.000000e+00> : vector<16x128xf32>
    %20 = tpu.matmul %18, %19, %cst_15 {dimension_numbers = #tpu.dot_dimension_numbers<[1], [0], [0], [1], [0, 0, 1, 1], [], []>} : vector<16x128xbf16>, vector<128x128xbf16>, vector<16x128xf32> -> vector<16x128xf32>
    %c0_16 = arith.constant 0 : index
    %c0_17 = arith.constant 0 : index
    %21 = vector.load %arg2[%c0_16, %c0_17] : memref<16x128xbf16, #tpu.memory_space<vmem>>, vector<16x128xbf16>
    %c384_18 = arith.constant 384 : index
    %c0_19 = arith.constant 0 : index
    %22 = vector.load %arg4[%c384_18, %c0_19] : memref<640x128xbf16, #tpu.memory_space<vmem>>, vector<128x128xbf16>
    %cst_20 = arith.constant dense<0.000000e+00> : vector<16x128xf32>
    %23 = tpu.matmul %21, %22, %cst_20 {dimension_numbers = #tpu.dot_dimension_numbers<[1], [0], [0], [1], [0, 0, 1, 1], [], []>} : vector<16x128xbf16>, vector<128x128xbf16>, vector<16x128xf32> -> vector<16x128xf32>
    %24 = arith.addf %20, %23 : vector<16x128xf32>
    %25 = vector.broadcast %2 : vector<1x128xf32> to vector<16x128xf32>
    %26 = arith.addf %24, %25 : vector<16x128xf32>
    %cst_21 = arith.constant 0.000000e+00 : f32
    %27 = vector.broadcast %cst_21 : f32 to vector<16x128xf32>
    %28 = arith.maximumf %26, %27 : vector<16x128xf32>
    %29 = arith.truncf %28 : vector<16x128xf32> to vector<16x128xbf16>
    %c512_22 = arith.constant 512 : index
    %c0_23 = arith.constant 0 : index
    %30 = vector.load %arg4[%c512_22, %c0_23] : memref<640x128xbf16, #tpu.memory_space<vmem>>, vector<128x128xbf16>
    %cst_24 = arith.constant dense<0.000000e+00> : vector<16x128xf32>
    %31 = tpu.matmul %29, %30, %cst_24 {dimension_numbers = #tpu.dot_dimension_numbers<[1], [0], [0], [1], [0, 0, 1, 1], [], []>} : vector<16x128xbf16>, vector<128x128xbf16>, vector<16x128xf32> -> vector<16x128xf32>
    %32 = vector.broadcast %3 : vector<1x128xf32> to vector<16x128xf32>
    %33 = arith.addf %31, %32 : vector<16x128xf32>
    %c0_25 = arith.constant 0 : index
    %c0_26 = arith.constant 0 : index
    %34 = vector.load %arg6[%c0_25, %c0_26] : memref<16x128xf32, #tpu.memory_space<vmem>>, vector<16x128xf32>
    tpu.vector_store %arg6[%c0_25, %c0_26], %33 {strides = array<i32>} : memref<16x128xf32, #tpu.memory_space<vmem>>, vector<16x128xf32>,
    return
  }
  func.func @transform_0(%arg0: i32) -> (i32, i32) {
    %c0_i32 = arith.constant 0 : i32
    %c0_i32_0 = arith.constant 0 : i32
    return %arg0, %c0_i32 : i32, i32
  }
  func.func @transform_1(%arg0: i32) -> (i32, i32) {
    %c0_i32 = arith.constant 0 : i32
    %c0_i32_0 = arith.constant 0 : i32
    return %arg0, %c0_i32 : i32, i32
  }
  func.func @transform_2(%arg0: i32) -> (i32, i32) {
    %c0_i32 = arith.constant 0 : i32
    %c0_i32_0 = arith.constant 0 : i32
    %c0_i32_1 = arith.constant 0 : i32
    return %c0_i32, %c0_i32_0 : i32, i32
  }
  func.func @transform_3(%arg0: i32) -> (i32, i32) {
    %c0_i32 = arith.constant 0 : i32
    %c0_i32_0 = arith.constant 0 : i32
    %c0_i32_1 = arith.constant 0 : i32
    return %c0_i32, %c0_i32_0 : i32, i32
  }
  func.func @transform_4(%arg0: i32) -> (i32, i32) {
    %c0_i32 = arith.constant 0 : i32
    %c0_i32_0 = arith.constant 0 : i32
    %c0_i32_1 = arith.constant 0 : i32
    return %c0_i32, %c0_i32_0 : i32, i32
  }
  func.func @transform_5(%arg0: i32) -> (i32, i32) {
    %c0_i32 = arith.constant 0 : i32
    %c0_i32_0 = arith.constant 0 : i32
    return %arg0, %c0_i32 : i32, i32
  }
}

</mosaic_0001>

<llo_original>
// kernel: action_net_forward.1
$region0: #{action_net_forward.1}
  #allocation0 [shape = 'u32[]', space=smem, size = 0x4, offset = 0x4, fixed_abs, tag = 'smem constant byte address 0x4 - core index']
  #allocation1 [shape = 'u32[144,128]{1,0:T(1,128)}', space=vmem, size = 0x12000, scoped, tag = 'internal scratch']
  %s0 = inlined_call_operand.vmem [shape: bf16[16,512], index: 0, kind: input, shape index: {}]
  %s1 = inlined_call_operand.vmem [shape: bf16[16,128], index: 1, kind: input, shape index: {}]
  %s2 = inlined_call_operand.hbm [shape: bf16[512,256], index: 2, kind: input, shape index: {}]
  %s3 = inlined_call_operand.hbm [shape: bf16[640,128], index: 3, kind: input, shape index: {}]
  %s4 = inlined_call_operand.vmem [shape: f32[1,640], index: 4, kind: input, shape index: {}]
  %s5 = inlined_call_operand.vmem [shape: f32[16,128], index: 5, kind: output, shape index: {}]
  %s6 = sld [smem:[#allocation0]]
  $region38: #{action_net_forward.1} parent=0
    _
  %s8 = ssub.s32 1, %s6
  %s9 = scalar_select 0, %s8, %s6
  $region1: #{action_net_forward.1} parent=0
    #allocation2 [shape = 'u8[262144]{0}', space=vmem, size = 0x40000, scoped, tag = 'input window, operand 2, single buffered']
    #allocation3 [shape = 's32[1]{0}', space=sflag, size = 0x4, scoped, tag = 'scoped memory for action_net_forward.1']
    #allocation4 [shape = 'u8[163840]{0}', space=vmem, size = 0x28000, scoped, tag = 'input window, operand 3, single buffered']
    #allocation5 [shape = 's32[1]{0}', space=sflag, size = 0x4, scoped, tag = 'scoped memory for action_net_forward.1']
    %10 = vsyncpa [#allocation3], 0
    %11 = vsyncpa [#allocation5], 0
    // Predicated region
    $region2: #{action_net_forward.1} parent=1 // pred_check
      _
    $region3: #{action_net_forward.1} parent=1 // pred_check_branch
      %13 = sbr.rel (0) target = $region5
    $region4: #{action_net_forward.1} parent=1 // pred_region
      _
    $region5: #{action_net_forward.1} parent=1 // pred_fallthru
      _
    // Predicated region
    $region6: #{action_net_forward.1} parent=1 // pred_check
      _
    $region7: #{action_net_forward.1} parent=1 // pred_check_branch
      %15 = sbr.rel (0) target = $region9
    $region8: #{action_net_forward.1} parent=1 // pred_region
      _
    $region9: #{action_net_forward.1} parent=1 // pred_fallthru
      _
    // Predicated region
    $region10: #{action_net_forward.1} parent=1 // pred_check
      _
    $region11: #{action_net_forward.1} parent=1 // pred_check_branch
      %17 = sbr.rel (0) target = $region13
    $region12: #{action_net_forward.1} parent=1 // pred_region
      %s19 = ssub.s32 8192, 8192
      %20 = vsyncadd [#allocation3], %s19
      %s21 = sshll.u32 [#allocation2], 4
      %s22 = int_to_ptr.vmem [resolvable:$true] %s21
      %27 = dma.hbm_to_vmem [thread:$0]  %s2, 8192, %s22, [#allocation3], 128, 128, 8
    $region13: #{action_net_forward.1} parent=1 // pred_fallthru
      _
    // Predicated region
    $region14: #{action_net_forward.1} parent=1 // pred_check
      _
    $region15: #{action_net_forward.1} parent=1 // pred_check_branch
      %29 = sbr.rel (0) target = $region17
    $region16: #{action_net_forward.1} parent=1 // pred_region
      %s31 = ssub.s32 5120, 5120
      %32 = vsyncadd [#allocation5], %s31
      %s33 = sshll.u32 [#allocation4], 4
      %s34 = int_to_ptr.vmem [resolvable:$true] %s33
      %39 = dma.hbm_to_vmem [thread:$0]  %s3, 5120, %s34, [#allocation5], 64, 64, 4
    $region17: #{action_net_forward.1} parent=1 // pred_fallthru
      _
    // Predicated region
    $region18: #{action_net_forward.1} parent=1 // pred_check
      _
    $region19: #{action_net_forward.1} parent=1 // pred_check_branch
      %41 = sbr.rel (0) target = $region21
    $region20: #{action_net_forward.1} parent=1 // pred_region
      _
    $region21: #{action_net_forward.1} parent=1 // pred_fallthru
      _
    // Predicated region
    $region22: #{action_net_forward.1} parent=1 // pred_check
      _
    $region23: #{action_net_forward.1} parent=1 // pred_check_branch
      %43 = sbr.rel (0) target = $region25
    $region24: #{action_net_forward.1} parent=1 // pred_region
      %44 = dma.done [#allocation3], 8192
    $region25: #{action_net_forward.1} parent=1 // pred_fallthru
      _
    // Predicated region
    $region26: #{action_net_forward.1} parent=1 // pred_check
      _
    $region27: #{action_net_forward.1} parent=1 // pred_check_branch
      %46 = sbr.rel (0) target = $region29
    $region28: #{action_net_forward.1} parent=1 // pred_region
      %47 = dma.done [#allocation5], 5120
    $region29: #{action_net_forward.1} parent=1 // pred_fallthru
      _
    %v49 = vld [vmem:[%s4] sm:$0x3]
    %v50 = vld [vmem:[%s4 + $0x2] sm:$0x1]
    %v51 = vld [vmem:[%s4 + $0x3] sm:$0x1]
    %v52 = vld [vmem:[%s4 + $0x4] sm:$0x1]
    %v53 = vld [vmem:[%s0] sm:$0xff]
    %v54 = vld [vmem:[%s0 + $0x8] sm:$0xff]
    %v55 = vld [vmem:[%s0 + $0x10] sm:$0xff]
    %v56 = vld [vmem:[%s0 + $0x18] sm:$0xff]
    %v57 = vld [vmem:[#allocation2] sm:$0xff]
    %v58 = vld [vmem:[#allocation2 + $0x8] sm:$0xff]
    %v59 = vld [vmem:[#allocation2 + $0x10] sm:$0xff]
    %v60 = vld [vmem:[#allocation2 + $0x18] sm:$0xff]
    %v61 = vld [vmem:[#allocation2 + $0x20] sm:$0xff]
    %v62 = vld [vmem:[#allocation2 + $0x28] sm:$0xff]
    %v63 = vld [vmem:[#allocation2 + $0x30] sm:$0xff]
    %v64 = vld [vmem:[#allocation2 + $0x38] sm:$0xff]
    %v65 = vld [vmem:[#allocation2 + $0x40] sm:$0xff]
    %v66 = vld [vmem:[#allocation2 + $0x48] sm:$0xff]
    %v67 = vld [vmem:[#allocation2 + $0x50] sm:$0xff]
    %v68 = vld [vmem:[#allocation2 + $0x58] sm:$0xff]
    %v69 = vld [vmem:[#allocation2 + $0x60] sm:$0xff]
    %v70 = vld [vmem:[#allocation2 + $0x68] sm:$0xff]
    %v71 = vld [vmem:[#allocation2 + $0x70] sm:$0xff]
    %v72 = vld [vmem:[#allocation2 + $0x78] sm:$0xff]
    %v73 = vld [vmem:[#allocation2 + $0x80] sm:$0xff]
    %v74 = vld [vmem:[#allocation2 + $0x88] sm:$0xff]
    %v75 = vld [vmem:[#allocation2 + $0x90] sm:$0xff]
    %v76 = vld [vmem:[#allocation2 + $0x98] sm:$0xff]
    %v77 = vld [vmem:[#allocation2 + $0xa0] sm:$0xff]
    %v78 = vld [vmem:[#allocation2 + $0xa8] sm:$0xff]
    %v79 = vld [vmem:[#allocation2 + $0xb0] sm:$0xff]
    %v80 = vld [vmem:[#allocation2 + $0xb8] sm:$0xff]
    %v81 = vld [vmem:[#allocation2 + $0xc0] sm:$0xff]
    %v82 = vld [vmem:[#allocation2 + $0xc8] sm:$0xff]
    %v83 = vld [vmem:[#allocation2 + $0xd0] sm:$0xff]
    %v84 = vld [vmem:[#allocation2 + $0xd8] sm:$0xff]
    %v85 = vld [vmem:[#allocation2 + $0xe0] sm:$0xff]
    %v86 = vld [vmem:[#allocation2 + $0xe8] sm:$0xff]
    %v87 = vld [vmem:[#allocation2 + $0xf0] sm:$0xff]
    %v88 = vld [vmem:[#allocation2 + $0xf8] sm:$0xff]
    %v89 = vld [vmem:[#allocation2 + $0x100] sm:$0xff]
    %v90 = vld [vmem:[#allocation2 + $0x108] sm:$0xff]
    %v91 = vld [vmem:[#allocation2 + $0x110] sm:$0xff]
    %v92 = vld [vmem:[#allocation2 + $0x118] sm:$0xff]
    %v93 = vld [vmem:[#allocation2 + $0x120] sm:$0xff]
    %v94 = vld [vmem:[#allocation2 + $0x128] sm:$0xff]
    %v95 = vld [vmem:[#allocation2 + $0x130] sm:$0xff]
    %v96 = vld [vmem:[#allocation2 + $0x138] sm:$0xff]
    %v97 = vld [vmem:[#allocation2 + $0x140] sm:$0xff]
    %v98 = vld [vmem:[#allocation2 + $0x148] sm:$0xff]
    %v99 = vld [vmem:[#allocation2 + $0x150] sm:$0xff]
    %v100 = vld [vmem:[#allocation2 + $0x158] sm:$0xff]
    %v101 = vld [vmem:[#allocation2 + $0x160] sm:$0xff]
    %v102 = vld [vmem:[#allocation2 + $0x168] sm:$0xff]
    %v103 = vld [vmem:[#allocation2 + $0x170] sm:$0xff]
    %v104 = vld [vmem:[#allocation2 + $0x178] sm:$0xff]
    %v105 = vld [vmem:[#allocation2 + $0x180] sm:$0xff]
    %v106 = vld [vmem:[#allocation2 + $0x188] sm:$0xff]
    %v107 = vld [vmem:[#allocation2 + $0x190] sm:$0xff]
    %v108 = vld [vmem:[#allocation2 + $0x198] sm:$0xff]
    %v109 = vld [vmem:[#allocation2 + $0x1a0] sm:$0xff]
    %v110 = vld [vmem:[#allocation2 + $0x1a8] sm:$0xff]
    %v111 = vld [vmem:[#allocation2 + $0x1b0] sm:$0xff]
    %v112 = vld [vmem:[#allocation2 + $0x1b8] sm:$0xff]
    %v113 = vld [vmem:[#allocation2 + $0x1c0] sm:$0xff]
    %v114 = vld [vmem:[#allocation2 + $0x1c8] sm:$0xff]
    %v115 = vld [vmem:[#allocation2 + $0x1d0] sm:$0xff]
    %v116 = vld [vmem:[#allocation2 + $0x1d8] sm:$0xff]
    %v117 = vld [vmem:[#allocation2 + $0x1e0] sm:$0xff]
    %v118 = vld [vmem:[#allocation2 + $0x1e8] sm:$0xff]
    %v119 = vld [vmem:[#allocation2 + $0x1f0] sm:$0xff]
    %v120 = vld [vmem:[#allocation2 + $0x1f8] sm:$0xff]
    %v122 = vlaneseq
    %v123 = vshrl.u32 %v122, 7
    %v124 = vsub.s32 0, %v123
    %v125 = vrot.slane %v49, %v124
    %v126 = vlaneseq
    %v127 = vshrl.u32 %v126, 7
    %v128 = vsub.s32 1, %v127
    %v129 = vrot.slane %v49, %v128
    %v136 = vunpack.c.l.b16 %v53
    %v137 = vunpack.c.h.b16 %v53
    %v138 = vunpack.c.l.b16 %v54
    %v139 = vunpack.c.h.b16 %v54
    %v140 = vunpack.c.l.b16 %v55
    %v141 = vunpack.c.h.b16 %v55
    %v142 = vunpack.c.l.b16 %v56
    %v143 = vunpack.c.h.b16 %v56
    %v144 = vpack.c.b16 %v140, %v136
    %v145 = vpack.c.b16 %v141, %v137
    %v146 = vpack.c.b16 %v142, %v138
    %v147 = vpack.c.b16 %v143, %v139
    %v216 = vunpack.c.l.b16 %v57
    %v217 = vunpack.c.h.b16 %v57
    %v218 = vunpack.c.l.b16 %v58
    %v219 = vunpack.c.h.b16 %v58
    %v220 = vunpack.c.l.b16 %v59
    %v221 = vunpack.c.h.b16 %v59
    %v222 = vunpack.c.l.b16 %v60
    %v223 = vunpack.c.h.b16 %v60
    %v224 = vunpack.c.l.b16 %v61
    %v225 = vunpack.c.h.b16 %v61
    %v226 = vunpack.c.l.b16 %v62
    %v227 = vunpack.c.h.b16 %v62
    %v228 = vunpack.c.l.b16 %v63
    %v229 = vunpack.c.h.b16 %v63
    %v230 = vunpack.c.l.b16 %v64
    %v231 = vunpack.c.h.b16 %v64
    %v232 = vunpack.c.l.b16 %v65
    %v233 = vunpack.c.h.b16 %v65
    %v234 = vunpack.c.l.b16 %v66
    %v235 = vunpack.c.h.b16 %v66
    %v236 = vunpack.c.l.b16 %v67
    %v237 = vunpack.c.h.b16 %v67
    %v238 = vunpack.c.l.b16 %v68
    %v239 = vunpack.c.h.b16 %v68
    %v240 = vunpack.c.l.b16 %v69
    %v241 = vunpack.c.h.b16 %v69
    %v242 = vunpack.c.l.b16 %v70
    %v243 = vunpack.c.h.b16 %v70
    %v244 = vunpack.c.l.b16 %v71
    %v245 = vunpack.c.h.b16 %v71
    %v246 = vunpack.c.l.b16 %v72
    %v247 = vunpack.c.h.b16 %v72
    %v248 = vunpack.c.l.b16 %v73
    %v249 = vunpack.c.h.b16 %v73
    %v250 = vunpack.c.l.b16 %v74
    %v251 = vunpack.c.h.b16 %v74
    %v252 = vunpack.c.l.b16 %v75
    %v253 = vunpack.c.h.b16 %v75
    %v254 = vunpack.c.l.b16 %v76
    %v255 = vunpack.c.h.b16 %v76
    %v256 = vunpack.c.l.b16 %v77
    %v257 = vunpack.c.h.b16 %v77
    %v258 = vunpack.c.l.b16 %v78
    %v259 = vunpack.c.h.b16 %v78
    %v260 = vunpack.c.l.b16 %v79
    %v261 = vunpack.c.h.b16 %v79
    %v262 = vunpack.c.l.b16 %v80
    %v263 = vunpack.c.h.b16 %v80
    %v264 = vunpack.c.l.b16 %v81
    %v265 = vunpack.c.h.b16 %v81
    %v266 = vunpack.c.l.b16 %v82
    %v267 = vunpack.c.h.b16 %v82
    %v268 = vunpack.c.l.b16 %v83
    %v269 = vunpack.c.h.b16 %v83
    %v270 = vunpack.c.l.b16 %v84
    %v271 = vunpack.c.h.b16 %v84
    %v272 = vunpack.c.l.b16 %v85
    %v273 = vunpack.c.h.b16 %v85
    %v274 = vunpack.c.l.b16 %v86
    %v275 = vunpack.c.h.b16 %v86
    %v276 = vunpack.c.l.b16 %v87
    %v277 = vunpack.c.h.b16 %v87
    %v278 = vunpack.c.l.b16 %v88
    %v279 = vunpack.c.h.b16 %v88
    %v280 = vunpack.c.l.b16 %v89
    %v281 = vunpack.c.h.b16 %v89
    %v282 = vunpack.c.l.b16 %v90
    %v283 = vunpack.c.h.b16 %v90
    %v284 = vunpack.c.l.b16 %v91
    %v285 = vunpack.c.h.b16 %v91
    %v286 = vunpack.c.l.b16 %v92
    %v287 = vunpack.c.h.b16 %v92
    %v288 = vunpack.c.l.b16 %v93
    %v289 = vunpack.c.h.b16 %v93
    %v290 = vunpack.c.l.b16 %v94
    %v291 = vunpack.c.h.b16 %v94
    %v292 = vunpack.c.l.b16 %v95
    %v293 = vunpack.c.h.b16 %v95
    %v294 = vunpack.c.l.b16 %v96
    %v295 = vunpack.c.h.b16 %v96
    %v296 = vunpack.c.l.b16 %v97
    %v297 = vunpack.c.h.b16 %v97
    %v298 = vunpack.c.l.b16 %v98
    %v299 = vunpack.c.h.b16 %v98
    %v300 = vunpack.c.l.b16 %v99
    %v301 = vunpack.c.h.b16 %v99
    %v302 = vunpack.c.l.b16 %v100
    %v303 = vunpack.c.h.b16 %v100
    %v304 = vunpack.c.l.b16 %v101
    %v305 = vunpack.c.h.b16 %v101
    %v306 = vunpack.c.l.b16 %v102
    %v307 = vunpack.c.h.b16 %v102
    %v308 = vunpack.c.l.b16 %v103
    %v309 = vunpack.c.h.b16 %v103
    %v310 = vunpack.c.l.b16 %v104
    %v311 = vunpack.c.h.b16 %v104
    %v312 = vunpack.c.l.b16 %v105
    %v313 = vunpack.c.h.b16 %v105
    %v314 = vunpack.c.l.b16 %v106
    %v315 = vunpack.c.h.b16 %v106
    %v316 = vunpack.c.l.b16 %v107
    %v317 = vunpack.c.h.b16 %v107
    %v318 = vunpack.c.l.b16 %v108
    %v319 = vunpack.c.h.b16 %v108
    %v320 = vunpack.c.l.b16 %v109
    %v321 = vunpack.c.h.b16 %v109
    %v322 = vunpack.c.l.b16 %v110
    %v323 = vunpack.c.h.b16 %v110
    %v324 = vunpack.c.l.b16 %v111
    %v325 = vunpack.c.h.b16 %v111
    %v326 = vunpack.c.l.b16 %v112
    %v327 = vunpack.c.h.b16 %v112
    %v328 = vunpack.c.l.b16 %v113
    %v329 = vunpack.c.h.b16 %v113
    %v330 = vunpack.c.l.b16 %v114
    %v331 = vunpack.c.h.b16 %v114
    %v332 = vunpack.c.l.b16 %v115
    %v333 = vunpack.c.h.b16 %v115
    %v334 = vunpack.c.l.b16 %v116
    %v335 = vunpack.c.h.b16 %v116
    %v336 = vunpack.c.l.b16 %v117
    %v337 = vunpack.c.h.b16 %v117
    %v338 = vunpack.c.l.b16 %v118
    %v339 = vunpack.c.h.b16 %v118
    %v340 = vunpack.c.l.b16 %v119
    %v341 = vunpack.c.h.b16 %v119
    %v342 = vunpack.c.l.b16 %v120
    %v343 = vunpack.c.h.b16 %v120
    %v344 = vpack.c.b16 %v218, %v216
    %v345 = vpack.c.b16 %v219, %v217
    %v346 = vpack.c.b16 %v222, %v220
    %v347 = vpack.c.b16 %v223, %v221
    %v348 = vpack.c.b16 %v226, %v224
    %v349 = vpack.c.b16 %v227, %v225
    %v350 = vpack.c.b16 %v230, %v228
    %v351 = vpack.c.b16 %v231, %v229
    %v352 = vpack.c.b16 %v234, %v232
    %v353 = vpack.c.b16 %v235, %v233
    %v354 = vpack.c.b16 %v238, %v236
    %v355 = vpack.c.b16 %v239, %v237
    %v356 = vpack.c.b16 %v242, %v240
    %v357 = vpack.c.b16 %v243, %v241
    %v358 = vpack.c.b16 %v246, %v244
    %v359 = vpack.c.b16 %v247, %v245
    %v360 = vpack.c.b16 %v250, %v248
    %v361 = vpack.c.b16 %v251, %v249
    %v362 = vpack.c.b16 %v254, %v252
    %v363 = vpack.c.b16 %v255, %v253
    %v364 = vpack.c.b16 %v258, %v256
    %v365 = vpack.c.b16 %v259, %v257
    %v366 = vpack.c.b16 %v262, %v260
    %v367 = vpack.c.b16 %v263, %v261
    %v368 = vpack.c.b16 %v266, %v264
    %v369 = vpack.c.b16 %v267, %v265
    %v370 = vpack.c.b16 %v270, %v268
    %v371 = vpack.c.b16 %v271, %v269
    %v372 = vpack.c.b16 %v274, %v272
    %v373 = vpack.c.b16 %v275, %v273
    %v374 = vpack.c.b16 %v278, %v276
    %v375 = vpack.c.b16 %v279, %v277
    %v376 = vpack.c.b16 %v282, %v280
    %v377 = vpack.c.b16 %v283, %v281
    %v378 = vpack.c.b16 %v286, %v284
    %v379 = vpack.c.b16 %v287, %v285
    %v380 = vpack.c.b16 %v290, %v288
    %v381 = vpack.c.b16 %v291, %v289
    %v382 = vpack.c.b16 %v294, %v292
    %v383 = vpack.c.b16 %v295, %v293
    %v384 = vpack.c.b16 %v298, %v296
    %v385 = vpack.c.b16 %v299, %v297
    %v386 = vpack.c.b16 %v302, %v300
    %v387 = vpack.c.b16 %v303, %v301
    %v388 = vpack.c.b16 %v306, %v304
    %v389 = vpack.c.b16 %v307, %v305
    %v390 = vpack.c.b16 %v310, %v308
    %v391 = vpack.c.b16 %v311, %v309
    %v392 = vpack.c.b16 %v314, %v312
    %v393 = vpack.c.b16 %v315, %v313
    %v394 = vpack.c.b16 %v318, %v316
    %v395 = vpack.c.b16 %v319, %v317
    %v396 = vpack.c.b16 %v322, %v320
    %v397 = vpack.c.b16 %v323, %v321
    %v398 = vpack.c.b16 %v326, %v324
    %v399 = vpack.c.b16 %v327, %v325
    %v400 = vpack.c.b16 %v330, %v328
    %v401 = vpack.c.b16 %v331, %v329
    %v402 = vpack.c.b16 %v334, %v332
    %v403 = vpack.c.b16 %v335, %v333
    %v404 = vpack.c.b16 %v338, %v336
    %v405 = vpack.c.b16 %v339, %v337
    %v406 = vpack.c.b16 %v342, %v340
    %v407 = vpack.c.b16 %v343, %v341
    %472 = vmatprep.subr.bf16.mxu0 %v345
    %473 = vmatpush1.bf16.msra.mxu0 %v344
    %474 = vmatprep.subr.bf16.mxu0 %v347
    %475 = vmatpush1.bf16.msra.mxu0 %v346
    %476 = vmatprep.subr.bf16.mxu0 %v349
    %477 = vmatpush1.bf16.msra.mxu0 %v348
    %478 = vmatprep.subr.bf16.mxu0 %v351
    %479 = vmatpush1.bf16.msra.mxu0 %v350
    %480 = vmatprep.subr.bf16.mxu0 %v353
    %481 = vmatpush1.bf16.msra.mxu0 %v352
    %482 = vmatprep.subr.bf16.mxu0 %v355
    %483 = vmatpush1.bf16.msra.mxu0 %v354
    %484 = vmatprep.subr.bf16.mxu0 %v357
    %485 = vmatpush1.bf16.msra.mxu0 %v356
    %486 = vmatprep.subr.bf16.mxu0 %v359
    %487 = vmatpush1.bf16.msra.mxu0 %v358
    %488 = vmatprep.subr.bf16.mxu0 %v361
    %489 = vmatpush1.bf16.msra.mxu0 %v360
    %490 = vmatprep.subr.bf16.mxu0 %v363
    %491 = vmatpush1.bf16.msra.mxu0 %v362
    %492 = vmatprep.subr.bf16.mxu0 %v365
    %493 = vmatpush1.bf16.msra.mxu0 %v364
    %494 = vmatprep.subr.bf16.mxu0 %v367
    %495 = vmatpush1.bf16.msra.mxu0 %v366
    %496 = vmatprep.subr.bf16.mxu0 %v369
    %497 = vmatpush1.bf16.msra.mxu0 %v368
    %498 = vmatprep.subr.bf16.mxu0 %v371
    %499 = vmatpush1.bf16.msra.mxu0 %v370
    %500 = vmatprep.subr.bf16.mxu0 %v373
    %501 = vmatpush1.bf16.msra.mxu0 %v372
    %502 = vmatprep.subr.bf16.mxu0 %v375
    %503 = vmatpush1.bf16.msra.mxu0 %v374
    %504 = vmatprep.mubr.bf16.mxu0 %v145
    %505 = vmatmul.mubr.bf16.gmra.mrb[0].mxu0 %v144
    %v506 = vpop.f32.mrb[0].mxu0
    %v507 = vadd.f32 %v125, %v506
    %v508 = vpop.f32.mrb[0].mxu0
    %v509 = vadd.f32 %v129, %v508
    %v510 = vpop.f32.mrb[0].mxu0
    %v511 = vadd.f32 %v125, %v510
    %v512 = vpop.f32.mrb[0].mxu0
    %v513 = vadd.f32 %v129, %v512
    %514 = vdwg.mxu0
    %515 = vmatprep.subr.bf16.mxu0 %v377
    %516 = vmatpush1.bf16.msra.mxu0 %v376
    %517 = vmatprep.subr.bf16.mxu0 %v379
    %518 = vmatpush1.bf16.msra.mxu0 %v378
    %519 = vmatprep.subr.bf16.mxu0 %v381
    %520 = vmatpush1.bf16.msra.mxu0 %v380
    %521 = vmatprep.subr.bf16.mxu0 %v383
    %522 = vmatpush1.bf16.msra.mxu0 %v382
    %523 = vmatprep.subr.bf16.mxu0 %v385
    %524 = vmatpush1.bf16.msra.mxu0 %v384
    %525 = vmatprep.subr.bf16.mxu0 %v387
    %526 = vmatpush1.bf16.msra.mxu0 %v386
    %527 = vmatprep.subr.bf16.mxu0 %v389
    %528 = vmatpush1.bf16.msra.mxu0 %v388
    %529 = vmatprep.subr.bf16.mxu0 %v391
    %530 = vmatpush1.bf16.msra.mxu0 %v390
    %531 = vmatprep.subr.bf16.mxu0 %v393
    %532 = vmatpush1.bf16.msra.mxu0 %v392
    %533 = vmatprep.subr.bf16.mxu0 %v395
    %534 = vmatpush1.bf16.msra.mxu0 %v394
    %535 = vmatprep.subr.bf16.mxu0 %v397
    %536 = vmatpush1.bf16.msra.mxu0 %v396
    %537 = vmatprep.subr.bf16.mxu0 %v399
    %538 = vmatpush1.bf16.msra.mxu0 %v398
    %539 = vmatprep.subr.bf16.mxu0 %v401
    %540 = vmatpush1.bf16.msra.mxu0 %v400
    %541 = vmatprep.subr.bf16.mxu0 %v403
    %542 = vmatpush1.bf16.msra.mxu0 %v402
    %543 = vmatprep.subr.bf16.mxu0 %v405
    %544 = vmatpush1.bf16.msra.mxu0 %v404
    %545 = vmatprep.subr.bf16.mxu0 %v407
    %546 = vmatpush1.bf16.msra.mxu0 %v406
    %547 = vmatprep.mubr.bf16.mxu0 %v147
    %548 = vmatmul.mubr.bf16.gmra.mrb[0].mxu0 %v146
    %v549 = vpop.f32.mrb[0].mxu0
    %v550 = vadd.f32 %v507, %v549
    %v551 = vpop.f32.mrb[0].mxu0
    %v552 = vadd.f32 %v509, %v551
    %v553 = vpop.f32.mrb[0].mxu0
    %v554 = vadd.f32 %v511, %v553
    %v555 = vpop.f32.mrb[0].mxu0
    %v556 = vadd.f32 %v513, %v555
    %557 = vdwg.mxu0
    %v558 = vmax.f32 %v550, 0.0
    %v559 = vmax.f32 %v552, 0.0
    %v560 = vmax.f32 %v554, 0.0
    %v561 = vmax.f32 %v556, 0.0
    %v562 = vpack.c.bf16 %v560, %v558
    %v563 = vpack.c.bf16 %v561, %v559
    %v564 = vld [vmem:[#allocation4] sm:$0xf]
    %v565 = vld [vmem:[#allocation4 + $0x4] sm:$0xf]
    %v566 = vld [vmem:[#allocation4 + $0x8] sm:$0xf]
    %v567 = vld [vmem:[#allocation4 + $0xc] sm:$0xf]
    %v568 = vld [vmem:[#allocation4 + $0x10] sm:$0xf]
    %v569 = vld [vmem:[#allocation4 + $0x14] sm:$0xf]
    %v570 = vld [vmem:[#allocation4 + $0x18] sm:$0xf]
    %v571 = vld [vmem:[#allocation4 + $0x1c] sm:$0xf]
    %v572 = vld [vmem:[#allocation4 + $0x20] sm:$0xf]
    %v573 = vld [vmem:[#allocation4 + $0x24] sm:$0xf]
    %v574 = vld [vmem:[#allocation4 + $0x28] sm:$0xf]
    %v575 = vld [vmem:[#allocation4 + $0x2c] sm:$0xf]
    %v576 = vld [vmem:[#allocation4 + $0x30] sm:$0xf]
    %v577 = vld [vmem:[#allocation4 + $0x34] sm:$0xf]
    %v578 = vld [vmem:[#allocation4 + $0x38] sm:$0xf]
    %v579 = vld [vmem:[#allocation4 + $0x3c] sm:$0xf]
    %v580 = vld [vmem:[#allocation4 + $0x40] sm:$0xf]
    %v581 = vld [vmem:[#allocation4 + $0x44] sm:$0xf]
    %v582 = vld [vmem:[#allocation4 + $0x48] sm:$0xf]
    %v583 = vld [vmem:[#allocation4 + $0x4c] sm:$0xf]
    %v584 = vld [vmem:[#allocation4 + $0x50] sm:$0xf]
    %v585 = vld [vmem:[#allocation4 + $0x54] sm:$0xf]
    %v586 = vld [vmem:[#allocation4 + $0x58] sm:$0xf]
    %v587 = vld [vmem:[#allocation4 + $0x5c] sm:$0xf]
    %v588 = vld [vmem:[#allocation4 + $0x60] sm:$0xf]
    %v589 = vld [vmem:[#allocation4 + $0x64] sm:$0xf]
    %v590 = vld [vmem:[#allocation4 + $0x68] sm:$0xf]
    %v591 = vld [vmem:[#allocation4 + $0x6c] sm:$0xf]
    %v592 = vld [vmem:[#allocation4 + $0x70] sm:$0xf]
    %v593 = vld [vmem:[#allocation4 + $0x74] sm:$0xf]
    %v594 = vld [vmem:[#allocation4 + $0x78] sm:$0xf]
    %v595 = vld [vmem:[#allocation4 + $0x7c] sm:$0xf]
    %v597 = vlaneseq
    %v598 = vshrl.u32 %v597, 7
    %v599 = vsub.s32 0, %v598
    %v600 = vrot.slane %v50, %v599
    %v634 = vunpack.c.l.b16 %v564
    %v635 = vunpack.c.l.b16 %v565
    %v636 = vunpack.c.l.b16 %v566
    %v637 = vunpack.c.l.b16 %v567
    %v638 = vunpack.c.l.b16 %v568
    %v639 = vunpack.c.l.b16 %v569
    %v640 = vunpack.c.l.b16 %v570
    %v641 = vunpack.c.l.b16 %v571
    %v642 = vunpack.c.l.b16 %v572
    %v643 = vunpack.c.l.b16 %v573
    %v644 = vunpack.c.l.b16 %v574
    %v645 = vunpack.c.l.b16 %v575
    %v646 = vunpack.c.l.b16 %v576
    %v647 = vunpack.c.l.b16 %v577
    %v648 = vunpack.c.l.b16 %v578
    %v649 = vunpack.c.l.b16 %v579
    %v650 = vunpack.c.l.b16 %v580
    %v651 = vunpack.c.l.b16 %v581
    %v652 = vunpack.c.l.b16 %v582
    %v653 = vunpack.c.l.b16 %v583
    %v654 = vunpack.c.l.b16 %v584
    %v655 = vunpack.c.l.b16 %v585
    %v656 = vunpack.c.l.b16 %v586
    %v657 = vunpack.c.l.b16 %v587
    %v658 = vunpack.c.l.b16 %v588
    %v659 = vunpack.c.l.b16 %v589
    %v660 = vunpack.c.l.b16 %v590
    %v661 = vunpack.c.l.b16 %v591
    %v662 = vunpack.c.l.b16 %v592
    %v663 = vunpack.c.l.b16 %v593
    %v664 = vunpack.c.l.b16 %v594
    %v665 = vunpack.c.l.b16 %v595
    %v666 = vpack.c.b16 %v635, %v634
    %v667 = vpack.c.b16 %v637, %v636
    %v668 = vpack.c.b16 %v639, %v638
    %v669 = vpack.c.b16 %v641, %v640
    %v670 = vpack.c.b16 %v643, %v642
    %v671 = vpack.c.b16 %v645, %v644
    %v672 = vpack.c.b16 %v647, %v646
    %v673 = vpack.c.b16 %v649, %v648
    %v674 = vpack.c.b16 %v651, %v650
    %v675 = vpack.c.b16 %v653, %v652
    %v676 = vpack.c.b16 %v655, %v654
    %v677 = vpack.c.b16 %v657, %v656
    %v678 = vpack.c.b16 %v659, %v658
    %v679 = vpack.c.b16 %v661, %v660
    %v680 = vpack.c.b16 %v663, %v662
    %v681 = vpack.c.b16 %v665, %v664
    %698 = vmatprep.subr.bf16.mxu0 0
    %699 = vmatpush1.bf16.msra.mxu0 %v666
    %700 = vmatprep.subr.bf16.mxu0 0
    %701 = vmatpush1.bf16.msra.mxu0 %v667
    %702 = vmatprep.subr.bf16.mxu0 0
    %703 = vmatpush1.bf16.msra.mxu0 %v668
    %704 = vmatprep.subr.bf16.mxu0 0
    %705 = vmatpush1.bf16.msra.mxu0 %v669
    %706 = vmatprep.subr.bf16.mxu0 0
    %707 = vmatpush1.bf16.msra.mxu0 %v670
    %708 = vmatprep.subr.bf16.mxu0 0
    %709 = vmatpush1.bf16.msra.mxu0 %v671
    %710 = vmatprep.subr.bf16.mxu0 0
    %711 = vmatpush1.bf16.msra.mxu0 %v672
    %712 = vmatprep.subr.bf16.mxu0 0
    %713 = vmatpush1.bf16.msra.mxu0 %v673
    %714 = vmatprep.subr.bf16.mxu0 0
    %715 = vmatpush1.bf16.msra.mxu0 %v674
    %716 = vmatprep.subr.bf16.mxu0 0
    %717 = vmatpush1.bf16.msra.mxu0 %v675
    %718 = vmatprep.subr.bf16.mxu0 0
    %719 = vmatpush1.bf16.msra.mxu0 %v676
    %720 = vmatprep.subr.bf16.mxu0 0
    %721 = vmatpush1.bf16.msra.mxu0 %v677
    %722 = vmatprep.subr.bf16.mxu0 0
    %723 = vmatpush1.bf16.msra.mxu0 %v678
    %724 = vmatprep.subr.bf16.mxu0 0
    %725 = vmatpush1.bf16.msra.mxu0 %v679
    %726 = vmatprep.subr.bf16.mxu0 0
    %727 = vmatpush1.bf16.msra.mxu0 %v680
    %728 = vmatprep.subr.bf16.mxu0 0
    %729 = vmatpush1.bf16.msra.mxu0 %v681
    %730 = vmatprep.mubr.bf16.mxu0 %v563
    %731 = vmatmul.mubr.bf16.gmra.mrb[0].mxu0 %v562
    %v732 = vpop.f32.mrb[0].mxu0
    %v733 = vadd.f32 %v600, %v732
    %v734 = vpop.f32.mrb[0].mxu0
    %v735 = vpop.f32.mrb[0].mxu0
    %v736 = vadd.f32 %v600, %v735
    %v737 = vpop.f32.mrb[0].mxu0
    %738 = vdwg.mxu0
    %v739 = vmax.f32 %v733, 0.0
    %v740 = vmax.f32 %v736, 0.0
    %v741 = vpack.c.bf16 %v740, %v739
    %v742 = vld [vmem:[#allocation4 + $0x80] sm:$0xf]
    %v743 = vld [vmem:[#allocation4 + $0x84] sm:$0xf]
    %v744 = vld [vmem:[#allocation4 + $0x88] sm:$0xf]
    %v745 = vld [vmem:[#allocation4 + $0x8c] sm:$0xf]
    %v746 = vld [vmem:[#allocation4 + $0x90] sm:$0xf]
    %v747 = vld [vmem:[#allocation4 + $0x94] sm:$0xf]
    %v748 = vld [vmem:[#allocation4 + $0x98] sm:$0xf]
    %v749 = vld [vmem:[#allocation4 + $0x9c] sm:$0xf]
    %v750 = vld [vmem:[#allocation4 + $0xa0] sm:$0xf]
    %v751 = vld [vmem:[#allocation4 + $0xa4] sm:$0xf]
    %v752 = vld [vmem:[#allocation4 + $0xa8] sm:$0xf]
    %v753 = vld [vmem:[#allocation4 + $0xac] sm:$0xf]
    %v754 = vld [vmem:[#allocation4 + $0xb0] sm:$0xf]
    %v755 = vld [vmem:[#allocation4 + $0xb4] sm:$0xf]
    %v756 = vld [vmem:[#allocation4 + $0xb8] sm:$0xf]
    %v757 = vld [vmem:[#allocation4 + $0xbc] sm:$0xf]
    %v758 = vld [vmem:[%s1] sm:$0xf]
    %v759 = vld [vmem:[%s1 + $0x4] sm:$0xf]
    %v760 = vld [vmem:[#allocation4 + $0xc0] sm:$0xf]
    %v761 = vld [vmem:[#allocation4 + $0xc4] sm:$0xf]
    %v762 = vld [vmem:[#allocation4 + $0xc8] sm:$0xf]
    %v763 = vld [vmem:[#allocation4 + $0xcc] sm:$0xf]
    %v764 = vld [vmem:[#allocation4 + $0xd0] sm:$0xf]
    %v765 = vld [vmem:[#allocation4 + $0xd4] sm:$0xf]
    %v766 = vld [vmem:[#allocation4 + $0xd8] sm:$0xf]
    %v767 = vld [vmem:[#allocation4 + $0xdc] sm:$0xf]
    %v768 = vld [vmem:[#allocation4 + $0xe0] sm:$0xf]
    %v769 = vld [vmem:[#allocation4 + $0xe4] sm:$0xf]
    %v770 = vld [vmem:[#allocation4 + $0xe8] sm:$0xf]
    %v771 = vld [vmem:[#allocation4 + $0xec] sm:$0xf]
    %v772 = vld [vmem:[#allocation4 + $0xf0] sm:$0xf]
    %v773 = vld [vmem:[#allocation4 + $0xf4] sm:$0xf]
    %v774 = vld [vmem:[#allocation4 + $0xf8] sm:$0xf]
    %v775 = vld [vmem:[#allocation4 + $0xfc] sm:$0xf]
    %v778 = vunpack.c.l.b16 %v758
    %v779 = vunpack.c.l.b16 %v759
    %v780 = vpack.c.b16 %v779, %v778
    %v798 = vunpack.c.l.b16 %v760
    %v799 = vunpack.c.l.b16 %v761
    %v800 = vunpack.c.l.b16 %v762
    %v801 = vunpack.c.l.b16 %v763
    %v802 = vunpack.c.l.b16 %v764
    %v803 = vunpack.c.l.b16 %v765
    %v804 = vunpack.c.l.b16 %v766
    %v805 = vunpack.c.l.b16 %v767
    %v806 = vunpack.c.l.b16 %v768
    %v807 = vunpack.c.l.b16 %v769
    %v808 = vunpack.c.l.b16 %v770
    %v809 = vunpack.c.l.b16 %v771
    %v810 = vunpack.c.l.b16 %v772
    %v811 = vunpack.c.l.b16 %v773
    %v812 = vunpack.c.l.b16 %v774
    %v813 = vunpack.c.l.b16 %v775
    %v814 = vpack.c.b16 %v799, %v798
    %v815 = vpack.c.b16 %v801, %v800
    %v816 = vpack.c.b16 %v803, %v802
    %v817 = vpack.c.b16 %v805, %v804
    %v818 = vpack.c.b16 %v807, %v806
    %v819 = vpack.c.b16 %v809, %v808
    %v820 = vpack.c.b16 %v811, %v810
    %v821 = vpack.c.b16 %v813, %v812
    %830 = vmatprep.subr.bf16.mxu0 0
    %831 = vmatpush1.bf16.msra.mxu0 %v814
    %832 = vmatprep.subr.bf16.mxu0 0
    %833 = vmatpush1.bf16.msra.mxu0 %v815
    %834 = vmatprep.subr.bf16.mxu0 0
    %835 = vmatpush1.bf16.msra.mxu0 %v816
    %836 = vmatprep.subr.bf16.mxu0 0
    %837 = vmatpush1.bf16.msra.mxu0 %v817
    %838 = vmatprep.subr.bf16.mxu0 0
    %839 = vmatpush1.bf16.msra.mxu0 %v818
    %840 = vmatprep.subr.bf16.mxu0 0
    %841 = vmatpush1.bf16.msra.mxu0 %v819
    %842 = vmatprep.subr.bf16.mxu0 0
    %843 = vmatpush1.bf16.msra.mxu0 %v820
    %844 = vmatprep.subr.bf16.mxu0 0
    %845 = vmatpush1.bf16.msra.mxu0 %v821
    %846 = vmatprep.subr.bf16.mxu0 0
    %847 = vmatpush1.bf16.msra.mxu0 0
    %848 = vmatprep.subr.bf16.mxu0 0
    %849 = vmatpush1.bf16.msra.mxu0 0
    %850 = vmatprep.subr.bf16.mxu0 0
    %851 = vmatpush1.bf16.msra.mxu0 0
    %852 = vmatprep.subr.bf16.mxu0 0
    %853 = vmatpush1.bf16.msra.mxu0 0
    %854 = vmatprep.subr.bf16.mxu0 0
    %855 = vmatpush1.bf16.msra.mxu0 0
    %856 = vmatprep.subr.bf16.mxu0 0
    %857 = vmatpush1.bf16.msra.mxu0 0
    %858 = vmatprep.subr.bf16.mxu0 0
    %859 = vmatpush1.bf16.msra.mxu0 0
    %860 = vmatprep.subr.bf16.mxu0 0
    %861 = vmatpush1.bf16.msra.mxu0 0
    %862 = vmatprep.mubr.bf16.mxu0 0
    %863 = vmatmul.mubr.bf16.gmra.mrb[0].mxu0 %v780
    %v864 = vpop.f32.mrb[0].mxu0
    %v865 = vadd.f32 0.0, %v864
    %v866 = vpop.f32.mrb[0].mxu0
    %v867 = vpop.f32.mrb[0].mxu0
    %v868 = vadd.f32 0.0, %v867
    %v869 = vpop.f32.mrb[0].mxu0
    %870 = vdwg.mxu0
    %v887 = vunpack.c.l.b16 %v742
    %v888 = vunpack.c.l.b16 %v743
    %v889 = vunpack.c.l.b16 %v744
    %v890 = vunpack.c.l.b16 %v745
    %v891 = vunpack.c.l.b16 %v746
    %v892 = vunpack.c.l.b16 %v747
    %v893 = vunpack.c.l.b16 %v748
    %v894 = vunpack.c.l.b16 %v749
    %v895 = vunpack.c.l.b16 %v750
    %v896 = vunpack.c.l.b16 %v751
    %v897 = vunpack.c.l.b16 %v752
    %v898 = vunpack.c.l.b16 %v753
    %v899 = vunpack.c.l.b16 %v754
    %v900 = vunpack.c.l.b16 %v755
    %v901 = vunpack.c.l.b16 %v756
    %v902 = vunpack.c.l.b16 %v757
    %v903 = vpack.c.b16 %v888, %v887
    %v904 = vpack.c.b16 %v890, %v889
    %v905 = vpack.c.b16 %v892, %v891
    %v906 = vpack.c.b16 %v894, %v893
    %v907 = vpack.c.b16 %v896, %v895
    %v908 = vpack.c.b16 %v898, %v897
    %v909 = vpack.c.b16 %v900, %v899
    %v910 = vpack.c.b16 %v902, %v901
    %919 = vmatprep.subr.bf16.mxu0 0
    %920 = vmatpush1.bf16.msra.mxu0 %v903
    %921 = vmatprep.subr.bf16.mxu0 0
    %922 = vmatpush1.bf16.msra.mxu0 %v904
    %923 = vmatprep.subr.bf16.mxu0 0
    %924 = vmatpush1.bf16.msra.mxu0 %v905
    %925 = vmatprep.subr.bf16.mxu0 0
    %926 = vmatpush1.bf16.msra.mxu0 %v906
    %927 = vmatprep.subr.bf16.mxu0 0
    %928 = vmatpush1.bf16.msra.mxu0 %v907
    %929 = vmatprep.subr.bf16.mxu0 0
    %930 = vmatpush1.bf16.msra.mxu0 %v908
    %931 = vmatprep.subr.bf16.mxu0 0
    %932 = vmatpush1.bf16.msra.mxu0 %v909
    %933 = vmatprep.subr.bf16.mxu0 0
    %934 = vmatpush1.bf16.msra.mxu0 %v910
    %935 = vmatprep.subr.bf16.mxu0 0
    %936 = vmatpush1.bf16.msra.mxu0 0
    %937 = vmatprep.subr.bf16.mxu0 0
    %938 = vmatpush1.bf16.msra.mxu0 0
    %939 = vmatprep.subr.bf16.mxu0 0
    %940 = vmatpush1.bf16.msra.mxu0 0
    %941 = vmatprep.subr.bf16.mxu0 0
    %942 = vmatpush1.bf16.msra.mxu0 0
    %943 = vmatprep.subr.bf16.mxu0 0
    %944 = vmatpush1.bf16.msra.mxu0 0
    %945 = vmatprep.subr.bf16.mxu0 0
    %946 = vmatpush1.bf16.msra.mxu0 0
    %947 = vmatprep.subr.bf16.mxu0 0
    %948 = vmatpush1.bf16.msra.mxu0 0
    %949 = vmatprep.subr.bf16.mxu0 0
    %950 = vmatpush1.bf16.msra.mxu0 0
    %951 = vmatprep.mubr.bf16.mxu0 0
    %952 = vmatmul.mubr.bf16.gmra.mrb[0].mxu0 %v741
    %v953 = vpop.f32.mrb[0].mxu0
    %v954 = vadd.f32 %v865, %v953
    %v955 = vpop.f32.mrb[0].mxu0
    %v956 = vpop.f32.mrb[0].mxu0
    %v957 = vadd.f32 %v868, %v956
    %v958 = vpop.f32.mrb[0].mxu0
    %959 = vdwg.mxu0
    %v961 = vlaneseq
    %v962 = vshrl.u32 %v961, 7
    %v963 = vsub.s32 0, %v962
    %v964 = vrot.slane %v51, %v963
    %v966 = vadd.f32 %v954, %v964
    %v967 = vadd.f32 %v957, %v964
    %v968 = vmax.f32 %v966, 0.0
    %v969 = vmax.f32 %v967, 0.0
    %v970 = vpack.c.bf16 %v969, %v968
    %v971 = vld [vmem:[#allocation4 + $0x100] sm:$0xf]
    %v972 = vld [vmem:[#allocation4 + $0x104] sm:$0xf]
    %v973 = vld [vmem:[#allocation4 + $0x108] sm:$0xf]
    %v974 = vld [vmem:[#allocation4 + $0x10c] sm:$0xf]
    %v975 = vld [vmem:[#allocation4 + $0x110] sm:$0xf]
    %v976 = vld [vmem:[#allocation4 + $0x114] sm:$0xf]
    %v977 = vld [vmem:[#allocation4 + $0x118] sm:$0xf]
    %v978 = vld [vmem:[#allocation4 + $0x11c] sm:$0xf]
    %v979 = vld [vmem:[#allocation4 + $0x120] sm:$0xf]
    %v980 = vld [vmem:[#allocation4 + $0x124] sm:$0xf]
    %v981 = vld [vmem:[#allocation4 + $0x128] sm:$0xf]
    %v982 = vld [vmem:[#allocation4 + $0x12c] sm:$0xf]
    %v983 = vld [vmem:[#allocation4 + $0x130] sm:$0xf]
    %v984 = vld [vmem:[#allocation4 + $0x134] sm:$0xf]
    %v985 = vld [vmem:[#allocation4 + $0x138] sm:$0xf]
    %v986 = vld [vmem:[#allocation4 + $0x13c] sm:$0xf]
    %v988 = vlaneseq
    %v989 = vshrl.u32 %v988, 7
    %v990 = vsub.s32 0, %v989
    %v991 = vrot.slane %v52, %v990
    %v1009 = vunpack.c.l.b16 %v971
    %v1010 = vunpack.c.l.b16 %v972
    %v1011 = vunpack.c.l.b16 %v973
    %v1012 = vunpack.c.l.b16 %v974
    %v1013 = vunpack.c.l.b16 %v975
    %v1014 = vunpack.c.l.b16 %v976
    %v1015 = vunpack.c.l.b16 %v977
    %v1016 = vunpack.c.l.b16 %v978
    %v1017 = vunpack.c.l.b16 %v979
    %v1018 = vunpack.c.l.b16 %v980
    %v1019 = vunpack.c.l.b16 %v981
    %v1020 = vunpack.c.l.b16 %v982
    %v1021 = vunpack.c.l.b16 %v983
    %v1022 = vunpack.c.l.b16 %v984
    %v1023 = vunpack.c.l.b16 %v985
    %v1024 = vunpack.c.l.b16 %v986
    %v1025 = vpack.c.b16 %v1010, %v1009
    %v1026 = vpack.c.b16 %v1012, %v1011
    %v1027 = vpack.c.b16 %v1014, %v1013
    %v1028 = vpack.c.b16 %v1016, %v1015
    %v1029 = vpack.c.b16 %v1018, %v1017
    %v1030 = vpack.c.b16 %v1020, %v1019
    %v1031 = vpack.c.b16 %v1022, %v1021
    %v1032 = vpack.c.b16 %v1024, %v1023
    %1041 = vmatprep.subr.bf16.mxu0 0
    %1042 = vmatpush1.bf16.msra.mxu0 %v1025
    %1043 = vmatprep.subr.bf16.mxu0 0
    %1044 = vmatpush1.bf16.msra.mxu0 %v1026
    %1045 = vmatprep.subr.bf16.mxu0 0
    %1046 = vmatpush1.bf16.msra.mxu0 %v1027
    %1047 = vmatprep.subr.bf16.mxu0 0
    %1048 = vmatpush1.bf16.msra.mxu0 %v1028
    %1049 = vmatprep.subr.bf16.mxu0 0
    %1050 = vmatpush1.bf16.msra.mxu0 %v1029
    %1051 = vmatprep.subr.bf16.mxu0 0
    %1052 = vmatpush1.bf16.msra.mxu0 %v1030
    %1053 = vmatprep.subr.bf16.mxu0 0
    %1054 = vmatpush1.bf16.msra.mxu0 %v1031
    %1055 = vmatprep.subr.bf16.mxu0 0
    %1056 = vmatpush1.bf16.msra.mxu0 %v1032
    %1057 = vmatprep.subr.bf16.mxu0 0
    %1058 = vmatpush1.bf16.msra.mxu0 0
    %1059 = vmatprep.subr.bf16.mxu0 0
    %1060 = vmatpush1.bf16.msra.mxu0 0
    %1061 = vmatprep.subr.bf16.mxu0 0
    %1062 = vmatpush1.bf16.msra.mxu0 0
    %1063 = vmatprep.subr.bf16.mxu0 0
    %1064 = vmatpush1.bf16.msra.mxu0 0
    %1065 = vmatprep.subr.bf16.mxu0 0
    %1066 = vmatpush1.bf16.msra.mxu0 0
    %1067 = vmatprep.subr.bf16.mxu0 0
    %1068 = vmatpush1.bf16.msra.mxu0 0
    %1069 = vmatprep.subr.bf16.mxu0 0
    %1070 = vmatpush1.bf16.msra.mxu0 0
    %1071 = vmatprep.subr.bf16.mxu0 0
    %1072 = vmatpush1.bf16.msra.mxu0 0
    %1073 = vmatprep.mubr.bf16.mxu0 0
    %1074 = vmatmul.mubr.bf16.gmra.mrb[0].mxu0 %v970
    %v1075 = vpop.f32.mrb[0].mxu0
    %v1076 = vadd.f32 %v991, %v1075
    %v1077 = vpop.f32.mrb[0].mxu0
    %v1078 = vpop.f32.mrb[0].mxu0
    %v1079 = vadd.f32 %v991, %v1078
    %v1080 = vpop.f32.mrb[0].mxu0
    %1081 = vdwg.mxu0
    %1082 = vst [vmem:[%s5] sm:$0xff] %v1076
    %1083 = vst [vmem:[%s5 + $0x8] sm:$0xff] %v1079
    // Predicated region
    $region30: #{action_net_forward.1} parent=1 // pred_check
      _
    $region31: #{action_net_forward.1} parent=1 // pred_check_branch
      %1085 = sbr.rel (0) target = $region33
    $region32: #{action_net_forward.1} parent=1 // pred_region
      _
    $region33: #{action_net_forward.1} parent=1 // pred_fallthru
      _
    // Predicated region
    $region34: #{action_net_forward.1} parent=1 // pred_check
      _
    $region35: #{action_net_forward.1} parent=1 // pred_check_branch
      %1087 = sbr.rel (0) target = $region37
    $region36: #{action_net_forward.1} parent=1 // pred_region
      _
    $region37: #{action_net_forward.1} parent=1 // pred_fallthru
      _
    %1088 = vsyncpa [#allocation3], 1
    %1089 = vsyncpa [#allocation5], 1

</llo_original>
